<compile_context>
chip_gen: v6e
topology: v6e:2x2x1
jax: 0.10.0
libtpu: 0.0.40
codegen_flags: <defaults>
</compile_context>

<pallas_src>
import jax
import jax.numpy as jnp
from jax.experimental import pallas as pl
from jax.experimental.pallas import tpu as pltpu

LANE = 128  # TPU lane width; hidden dim is padded to this for lane-dense MXU tiles.


def _round_up(n, m):
    return ((n + m - 1) // m) * m


def mlp_kernel(x_ref, w1_ref, b1_ref, w2_ref, b2_ref, o_ref):
    """Fused: (x @ W1 + b1) -> ReLU -> (@ W2 + b2). Accumulation in f32."""
    x = x_ref[...]
    w1 = w1_ref[...]
    w2 = w2_ref[...]

    # bf16 MXU path only if the weights were prepared as bf16 (trace-time branch;
    # the default f32 path has no casts at all).
    if w1.dtype == jnp.bfloat16:
        x = x.astype(jnp.bfloat16)

    # Hidden layer on MXU, bias + ReLU on VPU (f32).
    h = jnp.dot(x, w1, preferred_element_type=jnp.float32)
    h = jnp.maximum(h + b1_ref[...], 0.0)
    if w2.dtype == jnp.bfloat16:
        h = h.astype(jnp.bfloat16)

    # Output layer on MXU; store only the true-width logits (masked vst is fine
    # here — the kernel is HBM-bound, not store-slot-bound).
    out = jnp.dot(h, w2, preferred_element_type=jnp.float32)
    o_ref[...] = (out + b2_ref[...]).astype(o_ref.dtype)


def neural_network_forward(x, w1p, b1p, w2p, b2, *, tm=2048):
    """Forward pass of the MLP.

    x:    (B, input_size) f32 (or bf16 if weights are bf16)
    w1p:  (input_size, H_pad)  hidden weights, hidden dim zero-padded to 128
    b1p:  (1, H_pad)           hidden bias, zero-padded
    w2p:  (H_pad, output_size) output weights, rows zero-padded (cols NOT padded)
    b2:   (1, output_size)     output bias (unpadded)
    Returns logits (B, output_size) f32 — no wrapper-side pad/slice passes.
    """
    B, F = x.shape
    Hp = w1p.shape[1]
    O = w2p.shape[1]

    # Large batch tile for HBM-roofline throughput, but capped so the grid has
    # >=2 steps when possible (lets v7x megacore use both TensorCores).
    TM = max(8, min(tm, _round_up(pl.cdiv(B, 2), 8)))
    grid = (pl.cdiv(B, TM),)  # Pallas handles a ragged last block internally.

    itemsize = jnp.dtype(x.dtype).itemsize
    w_itemsize = jnp.dtype(w1p.dtype).itemsize
    cost = pl.CostEstimate(
        flops=2 * B * (F * Hp + Hp * O),
        transcendentals=0,
        bytes_accessed=(B * F * itemsize
                        + w1p.size * w_itemsize + b1p.size * 4
                        + w2p.size * w_itemsize + b2.size * 4
                        + B * O * 4),
    )

    return pl.pallas_call(
        mlp_kernel,
        out_shape=jax.ShapeDtypeStruct((B, O), jnp.float32),
        grid=grid,
        in_specs=[
            # x: tiled over batch.
            pl.BlockSpec((TM, F), lambda i: (i, 0)),
            # Weights / biases: constant block index -> resident in VMEM, DMA'd once.
            pl.BlockSpec((F, Hp), lambda i: (0, 0)),
            pl.BlockSpec((1, Hp), lambda i: (0, 0)),
            pl.BlockSpec((Hp, O), lambda i: (0, 0)),
            pl.BlockSpec((1, O), lambda i: (0, 0)),
        ],
        out_specs=pl.BlockSpec((TM, O), lambda i: (i, 0)),
        compiler_params=pltpu.CompilerParams(
            dimension_semantics=("parallel",),  # megacore split on v7x
        ),
        cost_estimate=cost,
    )(x, w1p, b1p, w2p, b2)


def init_params(key, input_size, hidden_size, output_size):
    """PyTorch-style nn.Linear init (uniform ±1/sqrt(fan_in)); weights stored
    as (in_features, out_features) so the kernel computes x @ W."""
    k1, k2, k3, k4 = jax.random.split(key, 4)
    bound1 = 1.0 / jnp.sqrt(input_size)
    bound2 = 1.0 / jnp.sqrt(hidden_size)
    w1 = jax.random.uniform(k1, (input_size, hidden_size), jnp.float32, -bound1, bound1)
    b1 = jax.random.uniform(k2, (1, hidden_size), jnp.float32, -bound1, bound1)
    w2 = jax.random.uniform(k3, (hidden_size, output_size), jnp.float32, -bound2, bound2)
    b2 = jax.random.uniform(k4, (1, output_size), jnp.float32, -bound2, bound2)
    return w1, b1, w2, b2


def pad_params(w1, b1, w2, b2, dtype=jnp.float32):
    """Zero-pad ONLY the hidden dim to the 128-lane width (exact: padded hidden
    units are ReLU(0)=0 and their W2 rows are zero).  The output feature dim is
    left at its true width so the kernel writes real logits with no HBM write
    amplification.  Optionally cast weights to bf16 here (once), not in-kernel."""
    in_f, hid = w1.shape
    Hp = _round_up(hid, LANE)
    w1p = jnp.pad(w1, ((0, 0), (0, Hp - hid))).astype(dtype)
    b1p = jnp.pad(b1, ((0, 0), (0, Hp - hid)))          # biases stay f32 (tiny)
    w2p = jnp.pad(w2, ((0, Hp - hid), (0, 0))).astype(dtype)
    return w1p, b1p, w2p, b2


if __name__ == "__main__":
    # Shapes implied by the module: sklearn digits -> input_size=64 features,
    # hidden_size=40, output_size=10 classes. Small batch of 8 for the check.
    batch = 8
    input_size = 64
    hidden_size = 40
    output_size = 10

    key = jax.random.PRNGKey(0)
    kx, kp = jax.random.split(key)
    x = jax.random.uniform(kx, (batch, input_size), jnp.float32, 0.0, 16.0)

    w1, b1, w2, b2 = init_params(kp, input_size, hidden_size, output_size)
    w1p, b1p, w2p, b2u = pad_params(w1, b1, w2, b2)  # f32 path (use dtype=jnp.bfloat16 for bf16 weights)

    out = neural_network_forward(x, w1p, b1p, w2p, b2u)
    out = jax.block_until_ready(out)

    # Reference in plain JAX with the ORIGINAL (unpadded) parameters — proves the
    # hidden-dim lane padding does not change the module's semantics.
    # (With bf16 weights the tolerance would need to be loosened to ~1e-2.)
    ref = jnp.maximum(x @ w1 + b1, 0.0) @ w2 + b2
    assert out.shape == (batch, output_size)
    assert jnp.allclose(out, ref, atol=1e-5, rtol=1e-5)

    print("KERNEL_OK")
</pallas_src>

<mosaic_0001>
module attributes {stable_mosaic.version = 11 : i64} {
  func.func @mlp_kernel(%arg0: i32, %arg1: memref<8x64xf32, #tpu.memory_space<vmem>>, %arg2: memref<64x128xf32, #tpu.memory_space<vmem>>, %arg3: memref<1x128xf32, #tpu.memory_space<vmem>>, %arg4: memref<128x10xf32, #tpu.memory_space<vmem>>, %arg5: memref<1x10xf32, #tpu.memory_space<vmem>>, %arg6: memref<8x10xf32, #tpu.memory_space<vmem>>) attributes {dimension_semantics = [#tpu.dimension_semantics<parallel>], iteration_bounds = array<i64: 1>, scalar_prefetch = 0 : i64, scratch_operands = 0 : i64, tpu.core_type = #tpu.core_type<tc>, window_params = [{transform_indices = @transform_0, window_bounds = array<i64: 8, 64>}, {pipeline_mode = #tpu.pipeline_mode<synchronous>, transform_indices = @transform_1, window_bounds = array<i64: 64, 128>}, {pipeline_mode = #tpu.pipeline_mode<synchronous>, transform_indices = @transform_2, window_bounds = array<i64: 1, 128>}, {pipeline_mode = #tpu.pipeline_mode<synchronous>, transform_indices = @transform_3, window_bounds = array<i64: 128, 10>}, {pipeline_mode = #tpu.pipeline_mode<synchronous>, transform_indices = @transform_4, window_bounds = array<i64: 1, 10>}, {transform_indices = @transform_5, window_bounds = array<i64: 8, 10>}]} {
    %c0 = arith.constant 0 : index
    %c0_0 = arith.constant 0 : index
    %0 = vector.load %arg1[%c0, %c0_0] : memref<8x64xf32, #tpu.memory_space<vmem>>, vector<8x64xf32>
    %c0_1 = arith.constant 0 : index
    %c0_2 = arith.constant 0 : index
    %1 = vector.load %arg2[%c0_1, %c0_2] : memref<64x128xf32, #tpu.memory_space<vmem>>, vector<64x128xf32>
    %c0_3 = arith.constant 0 : index
    %c0_4 = arith.constant 0 : index
    %2 = vector.load %arg4[%c0_3, %c0_4] : memref<128x10xf32, #tpu.memory_space<vmem>>, vector<128x10xf32>
    %cst = arith.constant dense<0.000000e+00> : vector<8x128xf32>
    %3 = tpu.matmul %0, %1, %cst {dimension_numbers = #tpu.dot_dimension_numbers<[1], [0], [0], [1], [0, 0, 1, 1], [], []>} : vector<8x64xf32>, vector<64x128xf32>, vector<8x128xf32> -> vector<8x128xf32>
    %c0_5 = arith.constant 0 : index
    %c0_6 = arith.constant 0 : index
    %4 = vector.load %arg3[%c0_5, %c0_6] : memref<1x128xf32, #tpu.memory_space<vmem>>, vector<1x128xf32>
    %5 = vector.broadcast %4 : vector<1x128xf32> to vector<8x128xf32>
    %6 = arith.addf %3, %5 : vector<8x128xf32>
    %cst_7 = arith.constant 0.000000e+00 : f32
    %7 = vector.broadcast %cst_7 : f32 to vector<8x128xf32>
    %8 = arith.maximumf %6, %7 : vector<8x128xf32>
    %cst_8 = arith.constant dense<0.000000e+00> : vector<8x10xf32>
    %9 = tpu.matmul %8, %2, %cst_8 {dimension_numbers = #tpu.dot_dimension_numbers<[1], [0], [0], [1], [0, 0, 1, 1], [], []>} : vector<8x128xf32>, vector<128x10xf32>, vector<8x10xf32> -> vector<8x10xf32>
    %c0_9 = arith.constant 0 : index
    %c0_10 = arith.constant 0 : index
    %10 = vector.load %arg5[%c0_9, %c0_10] : memref<1x10xf32, #tpu.memory_space<vmem>>, vector<1x10xf32>
    %11 = vector.broadcast %10 : vector<1x10xf32> to vector<8x10xf32>
    %12 = arith.addf %9, %11 : vector<8x10xf32>
    %c0_11 = arith.constant 0 : index
    %c0_12 = arith.constant 0 : index
    %13 = vector.load %arg6[%c0_11, %c0_12] : memref<8x10xf32, #tpu.memory_space<vmem>>, vector<8x10xf32>
    tpu.vector_store %arg6[%c0_11, %c0_12], %12 {strides = array<i32>} : memref<8x10xf32, #tpu.memory_space<vmem>>, vector<8x10xf32>,
    return
  }
  func.func @transform_0(%arg0: i32) -> (i32, i32) {
    %c0_i32 = arith.constant 0 : i32
    %c0_i32_0 = arith.constant 0 : i32
    return %arg0, %c0_i32 : i32, i32
  }
  func.func @transform_1(%arg0: i32) -> (i32, i32) {
    %c0_i32 = arith.constant 0 : i32
    %c0_i32_0 = arith.constant 0 : i32
    %c0_i32_1 = arith.constant 0 : i32
    return %c0_i32, %c0_i32_0 : i32, i32
  }
  func.func @transform_2(%arg0: i32) -> (i32, i32) {
    %c0_i32 = arith.constant 0 : i32
    %c0_i32_0 = arith.constant 0 : i32
    %c0_i32_1 = arith.constant 0 : i32
    return %c0_i32, %c0_i32_0 : i32, i32
  }
  func.func @transform_3(%arg0: i32) -> (i32, i32) {
    %c0_i32 = arith.constant 0 : i32
    %c0_i32_0 = arith.constant 0 : i32
    %c0_i32_1 = arith.constant 0 : i32
    return %c0_i32, %c0_i32_0 : i32, i32
  }
  func.func @transform_4(%arg0: i32) -> (i32, i32) {
    %c0_i32 = arith.constant 0 : i32
    %c0_i32_0 = arith.constant 0 : i32
    %c0_i32_1 = arith.constant 0 : i32
    return %c0_i32, %c0_i32_0 : i32, i32
  }
  func.func @transform_5(%arg0: i32) -> (i32, i32) {
    %c0_i32 = arith.constant 0 : i32
    %c0_i32_0 = arith.constant 0 : i32
    return %arg0, %c0_i32 : i32, i32
  }
}

</mosaic_0001>

<llo_original>
// kernel: tpu_custom_call.1
$region0: #{tpu_custom_call.1}
  #allocation0 [shape = 'u32[]', space=smem, size = 0x4, offset = 0x4, fixed_abs, tag = 'smem constant byte address 0x4 - core index']
  #allocation1 [shape = 'u32[144,128]{1,0:T(1,128)}', space=vmem, size = 0x12000, scoped, tag = 'internal scratch']
  %s0 = inlined_call_operand.vmem [shape: f32[8,64], index: 0, kind: input, shape index: {}]
  %s1 = inlined_call_operand.vmem [shape: f32[64,128], index: 1, kind: input, shape index: {}]
  %s2 = inlined_call_operand.vmem [shape: f32[1,128], index: 2, kind: input, shape index: {}]
  %s3 = inlined_call_operand.vmem [shape: f32[128,10], index: 3, kind: input, shape index: {}]
  %s4 = inlined_call_operand.vmem [shape: f32[1,10], index: 4, kind: input, shape index: {}]
  %s5 = inlined_call_operand.hbm [shape: f32[8,10], index: 5, kind: output, shape index: {}]
  %s6 = sld [smem:[#allocation0]]
  $region30: #{tpu_custom_call.1} parent=0
    _
  %s8 = ssub.s32 1, %s6
  %s9 = scalar_select 0, %s8, %s6
  $region1: #{tpu_custom_call.1} parent=0
    #allocation2 [shape = 'u8[4096]{0}', space=vmem, size = 0x1000, scoped, tag = 'output window, operand 0, single buffered']
    #allocation3 [shape = 's32[1]{0}', space=sflag, size = 0x4, scoped, tag = 'scoped memory for tpu_custom_call.1']
    %10 = vsyncpa [#allocation3], 0
    // Predicated region
    $region2: #{tpu_custom_call.1} parent=1 // pred_check
      _
    $region3: #{tpu_custom_call.1} parent=1 // pred_check_branch
      %12 = sbr.rel (0) target = $region5
    $region4: #{tpu_custom_call.1} parent=1 // pred_region
      _
    $region5: #{tpu_custom_call.1} parent=1 // pred_fallthru
      _
    // Predicated region
    $region6: #{tpu_custom_call.1} parent=1 // pred_check
      _
    $region7: #{tpu_custom_call.1} parent=1 // pred_check_branch
      %14 = sbr.rel (0) target = $region9
    $region8: #{tpu_custom_call.1} parent=1 // pred_region
      _
    $region9: #{tpu_custom_call.1} parent=1 // pred_fallthru
      _
    // Predicated region
    $region10: #{tpu_custom_call.1} parent=1 // pred_check
      _
    $region11: #{tpu_custom_call.1} parent=1 // pred_check_branch
      %16 = sbr.rel (0) target = $region13
    $region12: #{tpu_custom_call.1} parent=1 // pred_region
      _
    $region13: #{tpu_custom_call.1} parent=1 // pred_fallthru
      _
    // Predicated region
    $region14: #{tpu_custom_call.1} parent=1 // pred_check
      _
    $region15: #{tpu_custom_call.1} parent=1 // pred_check_branch
      %18 = sbr.rel (0) target = $region17
    $region16: #{tpu_custom_call.1} parent=1 // pred_region
      _
    $region17: #{tpu_custom_call.1} parent=1 // pred_fallthru
      _
    // Predicated region
    $region18: #{tpu_custom_call.1} parent=1 // pred_check
      _
    $region19: #{tpu_custom_call.1} parent=1 // pred_check_branch
      %20 = sbr.rel (0) target = $region21
    $region20: #{tpu_custom_call.1} parent=1 // pred_region
      _
    $region21: #{tpu_custom_call.1} parent=1 // pred_fallthru
      _
    %v21 = vld [vmem:[%s0] sm:$0xff]
    %v22 = vld [vmem:[%s1] sm:$0xff]
    %v23 = vld [vmem:[%s1 + $0x8] sm:$0xff]
    %v24 = vld [vmem:[%s1 + $0x10] sm:$0xff]
    %v25 = vld [vmem:[%s1 + $0x18] sm:$0xff]
    %v26 = vld [vmem:[%s1 + $0x20] sm:$0xff]
    %v27 = vld [vmem:[%s1 + $0x28] sm:$0xff]
    %v28 = vld [vmem:[%s1 + $0x30] sm:$0xff]
    %v29 = vld [vmem:[%s1 + $0x38] sm:$0xff]
    %v30 = vld [vmem:[%s3] sm:$0xff]
    %v31 = vld [vmem:[%s3 + $0x8] sm:$0xff]
    %v32 = vld [vmem:[%s3 + $0x10] sm:$0xff]
    %v33 = vld [vmem:[%s3 + $0x18] sm:$0xff]
    %v34 = vld [vmem:[%s3 + $0x20] sm:$0xff]
    %v35 = vld [vmem:[%s3 + $0x28] sm:$0xff]
    %v36 = vld [vmem:[%s3 + $0x30] sm:$0xff]
    %v37 = vld [vmem:[%s3 + $0x38] sm:$0xff]
    %v38 = vld [vmem:[%s3 + $0x40] sm:$0xff]
    %v39 = vld [vmem:[%s3 + $0x48] sm:$0xff]
    %v40 = vld [vmem:[%s3 + $0x50] sm:$0xff]
    %v41 = vld [vmem:[%s3 + $0x58] sm:$0xff]
    %v42 = vld [vmem:[%s3 + $0x60] sm:$0xff]
    %v43 = vld [vmem:[%s3 + $0x68] sm:$0xff]
    %v44 = vld [vmem:[%s3 + $0x70] sm:$0xff]
    %v45 = vld [vmem:[%s3 + $0x78] sm:$0xff]
    %v46 = vld [vmem:[%s2] sm:$0x1]
    %v48 = vlaneseq
    %v49 = vshrl.u32 %v48, 7
    %v50 = vsub.s32 0, %v49
    %v51 = vrot.slane %v46, %v50
    %vm53 = vcmask 523264
    %v55 = vsel %vm53, %v21, 0
    %57 = vmatprep.subr.mxu0 0.0
    %58 = vmatpush1.msra.mxu0 0.0
    %59 = vmatprep.subr.mxu0 0.0
    %60 = vmatpush1.msra.mxu0 0.0
    %61 = vmatprep.subr.mxu0 0.0
    %62 = vmatpush1.msra.mxu0 0.0
    %63 = vmatprep.subr.mxu0 0.0
    %64 = vmatpush1.msra.mxu0 0.0
    %65 = vmatprep.subr.mxu0 0.0
    %66 = vmatpush1.msra.mxu0 0.0
    %67 = vmatprep.subr.mxu0 0.0
    %68 = vmatpush1.msra.mxu0 0.0
    %69 = vmatprep.subr.mxu0 0.0
    %70 = vmatpush1.msra.mxu0 0.0
    %71 = vmatprep.subr.mxu0 0.0
    %72 = vmatpush1.msra.mxu0 0.0
    %73 = vmatprep.subr.mxu0 0.0
    %74 = vmatpush1.msra.mxu0 %v29
    %75 = vmatprep.subr.mxu0 0.0
    %76 = vmatpush1.msra.mxu0 %v28
    %77 = vmatprep.subr.mxu0 0.0
    %78 = vmatpush1.msra.mxu0 %v27
    %79 = vmatprep.subr.mxu0 0.0
    %80 = vmatpush1.msra.mxu0 %v26
    %81 = vmatprep.subr.mxu0 0.0
    %82 = vmatpush1.msra.mxu0 %v25
    %83 = vmatprep.subr.mxu0 0.0
    %84 = vmatpush1.msra.mxu0 %v24
    %85 = vmatprep.subr.mxu0 0.0
    %86 = vmatpush1.msra.mxu0 %v23
    %87 = vmatprep.subr.mxu0 0.0
    %88 = vmatpush1.msra.mxu0 %v22
    %89 = vmatprep.subr.mxu0 0.0
    %90 = vmatpush2.msra.mxu0 0.0
    %91 = vmatprep.subr.mxu0 0.0
    %92 = vmatpush2.msra.mxu0 0.0
    %93 = vmatprep.subr.mxu0 0.0
    %94 = vmatpush2.msra.mxu0 0.0
    %95 = vmatprep.subr.mxu0 0.0
    %96 = vmatpush2.msra.mxu0 0.0
    %97 = vmatprep.subr.mxu0 0.0
    %98 = vmatpush2.msra.mxu0 0.0
    %99 = vmatprep.subr.mxu0 0.0
    %100 = vmatpush2.msra.mxu0 0.0
    %101 = vmatprep.subr.mxu0 0.0
    %102 = vmatpush2.msra.mxu0 0.0
    %103 = vmatprep.subr.mxu0 0.0
    %104 = vmatpush2.msra.mxu0 0.0
    %105 = vmatprep.subr.mxu0 0.0
    %106 = vmatpush2.msra.mxu0 0.0
    %107 = vmatprep.subr.mxu0 0.0
    %108 = vmatpush2.msra.mxu0 0.0
    %109 = vmatprep.subr.mxu0 0.0
    %110 = vmatpush2.msra.mxu0 0.0
    %111 = vmatprep.subr.mxu0 0.0
    %112 = vmatpush2.msra.mxu0 0.0
    %113 = vmatprep.subr.mxu0 0.0
    %114 = vmatpush2.msra.mxu0 0.0
    %115 = vmatprep.subr.mxu0 0.0
    %116 = vmatpush2.msra.mxu0 0.0
    %117 = vmatprep.subr.mxu0 0.0
    %118 = vmatpush2.msra.mxu0 0.0
    %119 = vmatprep.subr.mxu0 0.0
    %120 = vmatpush2.msra.mxu0 0.0
    %121 = vmatprep.mubr.f32.mxu0 0.0
    %122 = vmatmul.mubr.f32.gmra.mxu0 %v55
    %v123 = vpop.f32.mrf.mxu0
    %v124 = vadd.f32 %v51, %v123
    %v125 = vpop.f32.mrf.mxu0
    %126 = vdwg.mxu0
    %v127 = vmax.f32 %v124, 0.0
    %v128 = vld [vmem:[%s4] sm:$0x1]
    %v130 = vlaneseq
    %v131 = vshrl.u32 %v130, 7
    %v132 = vsub.s32 0, %v131
    %v133 = vrot.slane %v128, %v132
    %135 = vmatprep.subr.mxu0 0.0
    %136 = vmatpush1.msra.mxu0 %v45
    %137 = vmatprep.subr.mxu0 0.0
    %138 = vmatpush1.msra.mxu0 %v44
    %139 = vmatprep.subr.mxu0 0.0
    %140 = vmatpush1.msra.mxu0 %v43
    %141 = vmatprep.subr.mxu0 0.0
    %142 = vmatpush1.msra.mxu0 %v42
    %143 = vmatprep.subr.mxu0 0.0
    %144 = vmatpush1.msra.mxu0 %v41
    %145 = vmatprep.subr.mxu0 0.0
    %146 = vmatpush1.msra.mxu0 %v40
    %147 = vmatprep.subr.mxu0 0.0
    %148 = vmatpush1.msra.mxu0 %v39
    %149 = vmatprep.subr.mxu0 0.0
    %150 = vmatpush1.msra.mxu0 %v38
    %151 = vmatprep.subr.mxu0 0.0
    %152 = vmatpush1.msra.mxu0 %v37
    %153 = vmatprep.subr.mxu0 0.0
    %154 = vmatpush1.msra.mxu0 %v36
    %155 = vmatprep.subr.mxu0 0.0
    %156 = vmatpush1.msra.mxu0 %v35
    %157 = vmatprep.subr.mxu0 0.0
    %158 = vmatpush1.msra.mxu0 %v34
    %159 = vmatprep.subr.mxu0 0.0
    %160 = vmatpush1.msra.mxu0 %v33
    %161 = vmatprep.subr.mxu0 0.0
    %162 = vmatpush1.msra.mxu0 %v32
    %163 = vmatprep.subr.mxu0 0.0
    %164 = vmatpush1.msra.mxu0 %v31
    %165 = vmatprep.subr.mxu0 0.0
    %166 = vmatpush1.msra.mxu0 %v30
    %167 = vmatprep.subr.mxu0 0.0
    %168 = vmatpush2.msra.mxu0 0.0
    %169 = vmatprep.subr.mxu0 0.0
    %170 = vmatpush2.msra.mxu0 0.0
    %171 = vmatprep.subr.mxu0 0.0
    %172 = vmatpush2.msra.mxu0 0.0
    %173 = vmatprep.subr.mxu0 0.0
    %174 = vmatpush2.msra.mxu0 0.0
    %175 = vmatprep.subr.mxu0 0.0
    %176 = vmatpush2.msra.mxu0 0.0
    %177 = vmatprep.subr.mxu0 0.0
    %178 = vmatpush2.msra.mxu0 0.0
    %179 = vmatprep.subr.mxu0 0.0
    %180 = vmatpush2.msra.mxu0 0.0
    %181 = vmatprep.subr.mxu0 0.0
    %182 = vmatpush2.msra.mxu0 0.0
    %183 = vmatprep.subr.mxu0 0.0
    %184 = vmatpush2.msra.mxu0 0.0
    %185 = vmatprep.subr.mxu0 0.0
    %186 = vmatpush2.msra.mxu0 0.0
    %187 = vmatprep.subr.mxu0 0.0
    %188 = vmatpush2.msra.mxu0 0.0
    %189 = vmatprep.subr.mxu0 0.0
    %190 = vmatpush2.msra.mxu0 0.0
    %191 = vmatprep.subr.mxu0 0.0
    %192 = vmatpush2.msra.mxu0 0.0
    %193 = vmatprep.subr.mxu0 0.0
    %194 = vmatpush2.msra.mxu0 0.0
    %195 = vmatprep.subr.mxu0 0.0
    %196 = vmatpush2.msra.mxu0 0.0
    %197 = vmatprep.subr.mxu0 0.0
    %198 = vmatpush2.msra.mxu0 0.0
    %199 = vmatprep.mubr.f32.mxu0 0.0
    %200 = vmatmul.mubr.f32.gmra.mxu0 %v127
    %v201 = vpop.f32.mrf.mxu0
    %v202 = vadd.f32 %v133, %v201
    %v203 = vpop.f32.mrf.mxu0
    %204 = vdwg.mxu0
    %vm205 = vcmask 80896
    %206 = vst.msk [vmem:[#allocation2] sm:$0xff] %vm205, %v202
    // Predicated region
    $region22: #{tpu_custom_call.1} parent=1 // pred_check
      _
    $region23: #{tpu_custom_call.1} parent=1 // pred_check_branch
      %208 = sbr.rel (0) target = $region25
    $region24: #{tpu_custom_call.1} parent=1 // pred_region
      %s210 = ssub.s32 128, 128
      %211 = vsyncadd [#allocation3], %s210
      %s213 = sshll.u32 [#allocation2], 4
      %s214 = int_to_ptr.vmem [resolvable:$true] %s213
      %216 = dma.vmem_to_hbm [thread:$0]  %s214, 128, %s5, [#allocation3]
    $region25: #{tpu_custom_call.1} parent=1 // pred_fallthru
      _
    // Predicated region
    $region26: #{tpu_custom_call.1} parent=1 // pred_check
      _
    $region27: #{tpu_custom_call.1} parent=1 // pred_check_branch
      %218 = sbr.rel (0) target = $region29
    $region28: #{tpu_custom_call.1} parent=1 // pred_region
      %219 = dma.done [#allocation3], 128
    $region29: #{tpu_custom_call.1} parent=1 // pred_fallthru
      _
    %220 = vsyncpa [#allocation3], 1

</llo_original>
